<compile_context>
chip_gen: v6e
topology: v6e:2x2x1
jax: 0.10.0
libtpu: 0.0.40
codegen_flags: <defaults>
</compile_context>

<pallas_src>
import jax
import jax.numpy as jnp
from jax.experimental import pallas as pl
from jax.experimental.pallas import tpu as pltpu

IN_FEATURES = 4
OUT_FEATURES = 1
LANES = 128
PACK = LANES                       # 128 samples per packed row
ROW_LANES = PACK * IN_FEATURES     # 512 input lanes per packed row
SUBLANE = 16                       # row-block alignment (covers f32 and bf16/f16)


def _round_up(a, m):
    return ((a + m - 1) // m) * m


def logreg_kernel(x_ref, m_ref, b_ref, o_ref):
    # x_ref: (tr, 512)  packed activations: 128 samples x 4 features per row
    # m_ref: (512, 128) block-diagonal map kron(I_128, w), resident in VMEM
    # b_ref: (1, 1)     bias scalar in SMEM
    # o_ref: (tr, 128)  lane-dense sigmoid outputs (row-major sample order)
    x = x_ref[...].astype(m_ref.dtype)   # no-op when dtypes already match
    z = jnp.dot(x, m_ref[...], preferred_element_type=jnp.float32)
    z = z + b_ref[0, 0]
    o_ref[...] = jax.nn.sigmoid(z).astype(o_ref.dtype)


def panic_disorder_logreg(x, weight, bias, *, block_rows=2048):
    """Forward of nn.Sequential(nn.Linear(4, 1), nn.Sigmoid()).

    x: (B, 4), weight: (1, 4), bias: (1,) -> (B, 1) in x's floating dtype.
    block_rows: cap on packed rows per grid step (multiple of 16).  The
    default 2048 moves ~4 MiB of input per step (f32); it may be raised to
    4096/8192 on v6e/v7x (footprint stays under the 32 MiB vmem limit set
    below).
    """
    B, F = x.shape
    assert F == IN_FEATURES and weight.shape == (OUT_FEATURES, IN_FEATURES)
    assert block_rows % SUBLANE == 0

    in_dtype = x.dtype if jnp.issubdtype(x.dtype, jnp.floating) else jnp.float32
    x = x.astype(in_dtype)                      # no-op for floating inputs
    out_dtype = in_dtype
    # MXU takes bf16 natively (f32 accumulation); other floats compute in f32.
    compute_dtype = jnp.bfloat16 if in_dtype == jnp.bfloat16 else jnp.float32

    w_f32 = weight.astype(jnp.float32)
    b_f32 = bias.astype(jnp.float32)

    B_main = (B // PACK) * PACK
    R = B_main // PACK
    outs = []

    if R > 0:
        # Copy-free packing: contiguous prefix slice + row-major reshape.
        x_packed = x[:B_main].reshape(R, ROW_LANES)

        # Block-diagonal map folds the 4-lane per-sample reduction into one
        # lane-dense MXU matmul: (tr,512) @ (512,128) -> (tr,128) logits.
        w_col = w_f32.reshape(IN_FEATURES, 1)
        m = jnp.kron(jnp.eye(PACK, dtype=jnp.float32), w_col).astype(compute_dtype)
        b2 = b_f32.reshape(1, 1)

        # Tile size: as large as block_rows allows, but keep >=4 grid steps
        # when the batch permits (pipelining overlap + v7x 2-TC sharding).
        tr = max(SUBLANE,
                 min(block_rows,
                     _round_up(pl.cdiv(R, 4), SUBLANE),
                     _round_up(R, SUBLANE)))
        grid = (pl.cdiv(R, tr),)

        x_bytes = jnp.dtype(in_dtype).itemsize
        o_bytes = jnp.dtype(out_dtype).itemsize
        m_bytes = jnp.dtype(compute_dtype).itemsize
        cost = pl.CostEstimate(
            flops=2 * B_main * IN_FEATURES,
            transcendentals=B_main,
            bytes_accessed=(B_main * IN_FEATURES * x_bytes
                            + B_main * o_bytes
                            + ROW_LANES * PACK * m_bytes))

        out_packed = pl.pallas_call(
            logreg_kernel,
            out_shape=jax.ShapeDtypeStruct((R, PACK), out_dtype),
            grid=grid,
            in_specs=[
                pl.BlockSpec((tr, ROW_LANES), lambda i: (i, 0)),    # activations
                pl.BlockSpec((ROW_LANES, PACK), lambda i: (0, 0)),  # map (resident)
                pl.BlockSpec(memory_space=pltpu.MemorySpace.SMEM),  # bias scalar
            ],
            out_specs=pl.BlockSpec((tr, PACK), lambda i: (i, 0)),
            compiler_params=pltpu.CompilerParams(
                dimension_semantics=("parallel",),
                vmem_limit_bytes=32 * 1024 * 1024),
            cost_estimate=cost,
        )(x_packed, m, b2)

        # (R, 128) -> (B_main, 1); free contiguous reshape, sample order kept.
        outs.append(out_packed.reshape(B_main, OUT_FEATURES))

    if B_main < B:
        # Tail (< 128 samples): tiny pure-JAX epilogue keeps bulk copy-free.
        x_tail = x[B_main:].astype(jnp.float32)
        z_tail = x_tail @ w_f32.T + b_f32
        outs.append(jax.nn.sigmoid(z_tail).astype(out_dtype))

    if len(outs) == 1:
        return outs[0]
    return jnp.concatenate(outs, axis=0)


if __name__ == "__main__":
    key = jax.random.PRNGKey(0)
    kx, kw, kb = jax.random.split(key, 3)

    # Deterministic parameter init mimicking nn.Linear's default
    # U(-1/sqrt(fan_in), 1/sqrt(fan_in)) bounds.
    bound = 1.0 / jnp.sqrt(jnp.float32(IN_FEATURES))
    weight = jax.random.uniform(
        kw, (OUT_FEATURES, IN_FEATURES), minval=-bound, maxval=bound,
        dtype=jnp.float32)
    bias = jax.random.uniform(
        kb, (OUT_FEATURES,), minval=-bound, maxval=bound, dtype=jnp.float32)

    fwd = jax.jit(panic_disorder_logreg)

    # Primary check: B = 2048 -> 16 packed rows, single full grid step.
    B = 2048
    x = jax.random.normal(kx, (B, IN_FEATURES), dtype=jnp.float32)
    out = fwd(x, weight, bias)
    jax.block_until_ready(out)
    ref = jax.nn.sigmoid(x @ weight.T + bias)
    assert out.shape == (B, OUT_FEATURES)
    assert jnp.allclose(out, ref, atol=1e-5), float(jnp.max(jnp.abs(out - ref)))

    # Secondary check: B = 5000 -> 39 packed rows (3 grid steps, ragged final
    # block handled by edge masking) + 8-sample pure-JAX tail epilogue.
    B2 = 5000
    x2 = jax.random.normal(jax.random.PRNGKey(1), (B2, IN_FEATURES),
                           dtype=jnp.float32)
    out2 = fwd(x2, weight, bias)
    jax.block_until_ready(out2)
    ref2 = jax.nn.sigmoid(x2 @ weight.T + bias)
    assert out2.shape == (B2, OUT_FEATURES)
    assert jnp.allclose(out2, ref2, atol=1e-5), float(jnp.max(jnp.abs(out2 - ref2)))

    print("KERNEL_OK")
</pallas_src>

<mosaic_0001>
module attributes {stable_mosaic.version = 11 : i64} {
  func.func @logreg_kernel(%arg0: i32, %arg1: memref<16x512xf32, #tpu.memory_space<vmem>>, %arg2: memref<512x128xf32, #tpu.memory_space<vmem>>, %arg3: memref<1x1xf32, #tpu.memory_space<smem>>, %arg4: memref<16x128xf32, #tpu.memory_space<vmem>>) attributes {dimension_semantics = [#tpu.dimension_semantics<parallel>], iteration_bounds = array<i64: 1>, scalar_prefetch = 0 : i64, scratch_operands = 0 : i64, tpu.core_type = #tpu.core_type<tc>, window_params = [{transform_indices = @transform_0, window_bounds = array<i64: 16, 512>}, {pipeline_mode = #tpu.pipeline_mode<synchronous>, transform_indices = @transform_1, window_bounds = array<i64: 512, 128>}, {transform_indices = @transform_2, window_bounds = array<i64: 1, 1>}, {transform_indices = @transform_3, window_bounds = array<i64: 16, 128>}]} {
    %c0 = arith.constant 0 : index
    %c0_0 = arith.constant 0 : index
    %0 = vector.load %arg1[%c0, %c0_0] : memref<16x512xf32, #tpu.memory_space<vmem>>, vector<16x512xf32>
    %c0_1 = arith.constant 0 : index
    %c0_2 = arith.constant 0 : index
    %1 = vector.load %arg2[%c0_1, %c0_2] : memref<512x128xf32, #tpu.memory_space<vmem>>, vector<512x128xf32>
    %cst = arith.constant dense<0.000000e+00> : vector<16x128xf32>
    %2 = tpu.matmul %0, %1, %cst {dimension_numbers = #tpu.dot_dimension_numbers<[1], [0], [0], [1], [0, 0, 1, 1], [], []>} : vector<16x512xf32>, vector<512x128xf32>, vector<16x128xf32> -> vector<16x128xf32>
    %c0_3 = arith.constant 0 : index
    %c0_4 = arith.constant 0 : index
    %3 = memref.load %arg3[%c0_3, %c0_4] : memref<1x1xf32, #tpu.memory_space<smem>>
    %4 = vector.broadcast %3 : f32 to vector<16x128xf32>
    %5 = arith.addf %2, %4 : vector<16x128xf32>
    %6 = arith.negf %5 : vector<16x128xf32>
    %7 = math.exp %6 : vector<16x128xf32>
    %cst_5 = arith.constant 1.000000e+00 : f32
    %8 = vector.broadcast %cst_5 : f32 to vector<16x128xf32>
    %9 = arith.addf %8, %7 : vector<16x128xf32>
    %10 = arith.divf %8, %9 : vector<16x128xf32>
    %c0_6 = arith.constant 0 : index
    %c0_7 = arith.constant 0 : index
    %11 = vector.load %arg4[%c0_6, %c0_7] : memref<16x128xf32, #tpu.memory_space<vmem>>, vector<16x128xf32>
    tpu.vector_store %arg4[%c0_6, %c0_7], %10 {strides = array<i32>} : memref<16x128xf32, #tpu.memory_space<vmem>>, vector<16x128xf32>,
    return
  }
  func.func @transform_0(%arg0: i32) -> (i32, i32) {
    %c0_i32 = arith.constant 0 : i32
    %c0_i32_0 = arith.constant 0 : i32
    return %arg0, %c0_i32 : i32, i32
  }
  func.func @transform_1(%arg0: i32) -> (i32, i32) {
    %c0_i32 = arith.constant 0 : i32
    %c0_i32_0 = arith.constant 0 : i32
    %c0_i32_1 = arith.constant 0 : i32
    return %c0_i32, %c0_i32_0 : i32, i32
  }
  func.func @transform_2(%arg0: i32) -> (i32, i32) {
    %c0_i32 = arith.constant 0 : i32
    %c0_i32_0 = arith.constant 0 : i32
    %c0_i32_1 = arith.constant 0 : i32
    return %c0_i32, %c0_i32_0 : i32, i32
  }
  func.func @transform_3(%arg0: i32) -> (i32, i32) {
    %c0_i32 = arith.constant 0 : i32
    %c0_i32_0 = arith.constant 0 : i32
    return %arg0, %c0_i32 : i32, i32
  }
}

</mosaic_0001>

<llo_original>
// kernel: panic_disorder_logreg.1
$region0: #{panic_disorder_logreg.1}
  #allocation0 [shape = 'u32[]', space=smem, size = 0x4, offset = 0x4, fixed_abs, tag = 'smem constant byte address 0x4 - core index']
  #allocation1 [shape = 'u32[144,128]{1,0:T(1,128)}', space=vmem, size = 0x12000, scoped, tag = 'internal scratch']
  #allocation2 [shape = 'f32[1,1]{1,0:T(1,128)S(6)}', space=smem, size = 0x200, scoped, tag = 'scoped memory for panic_disorder_logreg.1']
  %s0 = inlined_call_operand.vmem [shape: f32[16,512], index: 0, kind: input, shape index: {}]
  %s1 = inlined_call_operand.vmem [shape: f32[512,128], index: 1, kind: input, shape index: {}]
  %s2 = inlined_call_operand.<no memory space> [shape: f32[1,1], index: 2, kind: input, shape index: {}]
  %s3 = inlined_call_operand.hbm [shape: f32[16,128], index: 3, kind: output, shape index: {}]
  %s4 = sld [smem:[#allocation0]]
  $region22: #{panic_disorder_logreg.1} parent=0
    _
  %s6 = ssub.s32 1, %s4
  %s7 = scalar_select 0, %s6, %s4
  %8 = sst [smem:[#allocation2]] %s2
  $region1: #{panic_disorder_logreg.1} parent=0
    #allocation3 [shape = 'u8[8192]{0}', space=vmem, size = 0x2000, scoped, tag = 'output window, operand 0, single buffered']
    #allocation4 [shape = 's32[1]{0}', space=sflag, size = 0x4, scoped, tag = 'scoped memory for panic_disorder_logreg.1']
    %9 = vsyncpa [#allocation4], 0
    // Predicated region
    $region2: #{panic_disorder_logreg.1} parent=1 // pred_check
      _
    $region3: #{panic_disorder_logreg.1} parent=1 // pred_check_branch
      %11 = sbr.rel (0) target = $region5
    $region4: #{panic_disorder_logreg.1} parent=1 // pred_region
      _
    $region5: #{panic_disorder_logreg.1} parent=1 // pred_fallthru
      _
    // Predicated region
    $region6: #{panic_disorder_logreg.1} parent=1 // pred_check
      _
    $region7: #{panic_disorder_logreg.1} parent=1 // pred_check_branch
      %13 = sbr.rel (0) target = $region9
    $region8: #{panic_disorder_logreg.1} parent=1 // pred_region
      _
    $region9: #{panic_disorder_logreg.1} parent=1 // pred_fallthru
      _
    // Predicated region
    $region10: #{panic_disorder_logreg.1} parent=1 // pred_check
      _
    $region11: #{panic_disorder_logreg.1} parent=1 // pred_check_branch
      %15 = sbr.rel (0) target = $region13
    $region12: #{panic_disorder_logreg.1} parent=1 // pred_region
      _
    $region13: #{panic_disorder_logreg.1} parent=1 // pred_fallthru
      _
    %v16 = vld [vmem:[%s0] sm:$0xff]
    %v17 = vld [vmem:[%s0 + $0x8] sm:$0xff]
    %v18 = vld [vmem:[%s0 + $0x10] sm:$0xff]
    %v19 = vld [vmem:[%s0 + $0x18] sm:$0xff]
    %v20 = vld [vmem:[%s0 + $0x20] sm:$0xff]
    %v21 = vld [vmem:[%s0 + $0x28] sm:$0xff]
    %v22 = vld [vmem:[%s0 + $0x30] sm:$0xff]
    %v23 = vld [vmem:[%s0 + $0x38] sm:$0xff]
    %v24 = vld [vmem:[%s1] sm:$0xff]
    %v25 = vld [vmem:[%s1 + $0x8] sm:$0xff]
    %v26 = vld [vmem:[%s1 + $0x10] sm:$0xff]
    %v27 = vld [vmem:[%s1 + $0x18] sm:$0xff]
    %v28 = vld [vmem:[%s1 + $0x20] sm:$0xff]
    %v29 = vld [vmem:[%s1 + $0x28] sm:$0xff]
    %v30 = vld [vmem:[%s1 + $0x30] sm:$0xff]
    %v31 = vld [vmem:[%s1 + $0x38] sm:$0xff]
    %v32 = vld [vmem:[%s1 + $0x40] sm:$0xff]
    %v33 = vld [vmem:[%s1 + $0x48] sm:$0xff]
    %v34 = vld [vmem:[%s1 + $0x50] sm:$0xff]
    %v35 = vld [vmem:[%s1 + $0x58] sm:$0xff]
    %v36 = vld [vmem:[%s1 + $0x60] sm:$0xff]
    %v37 = vld [vmem:[%s1 + $0x68] sm:$0xff]
    %v38 = vld [vmem:[%s1 + $0x70] sm:$0xff]
    %v39 = vld [vmem:[%s1 + $0x78] sm:$0xff]
    %v40 = vld [vmem:[%s1 + $0x80] sm:$0xff]
    %v41 = vld [vmem:[%s1 + $0x88] sm:$0xff]
    %v42 = vld [vmem:[%s1 + $0x90] sm:$0xff]
    %v43 = vld [vmem:[%s1 + $0x98] sm:$0xff]
    %v44 = vld [vmem:[%s1 + $0xa0] sm:$0xff]
    %v45 = vld [vmem:[%s1 + $0xa8] sm:$0xff]
    %v46 = vld [vmem:[%s1 + $0xb0] sm:$0xff]
    %v47 = vld [vmem:[%s1 + $0xb8] sm:$0xff]
    %v48 = vld [vmem:[%s1 + $0xc0] sm:$0xff]
    %v49 = vld [vmem:[%s1 + $0xc8] sm:$0xff]
    %v50 = vld [vmem:[%s1 + $0xd0] sm:$0xff]
    %v51 = vld [vmem:[%s1 + $0xd8] sm:$0xff]
    %v52 = vld [vmem:[%s1 + $0xe0] sm:$0xff]
    %v53 = vld [vmem:[%s1 + $0xe8] sm:$0xff]
    %v54 = vld [vmem:[%s1 + $0xf0] sm:$0xff]
    %v55 = vld [vmem:[%s1 + $0xf8] sm:$0xff]
    %v56 = vld [vmem:[%s1 + $0x100] sm:$0xff]
    %v57 = vld [vmem:[%s1 + $0x108] sm:$0xff]
    %v58 = vld [vmem:[%s1 + $0x110] sm:$0xff]
    %v59 = vld [vmem:[%s1 + $0x118] sm:$0xff]
    %v60 = vld [vmem:[%s1 + $0x120] sm:$0xff]
    %v61 = vld [vmem:[%s1 + $0x128] sm:$0xff]
    %v62 = vld [vmem:[%s1 + $0x130] sm:$0xff]
    %v63 = vld [vmem:[%s1 + $0x138] sm:$0xff]
    %v64 = vld [vmem:[%s1 + $0x140] sm:$0xff]
    %v65 = vld [vmem:[%s1 + $0x148] sm:$0xff]
    %v66 = vld [vmem:[%s1 + $0x150] sm:$0xff]
    %v67 = vld [vmem:[%s1 + $0x158] sm:$0xff]
    %v68 = vld [vmem:[%s1 + $0x160] sm:$0xff]
    %v69 = vld [vmem:[%s1 + $0x168] sm:$0xff]
    %v70 = vld [vmem:[%s1 + $0x170] sm:$0xff]
    %v71 = vld [vmem:[%s1 + $0x178] sm:$0xff]
    %v72 = vld [vmem:[%s1 + $0x180] sm:$0xff]
    %v73 = vld [vmem:[%s1 + $0x188] sm:$0xff]
    %v74 = vld [vmem:[%s1 + $0x190] sm:$0xff]
    %v75 = vld [vmem:[%s1 + $0x198] sm:$0xff]
    %v76 = vld [vmem:[%s1 + $0x1a0] sm:$0xff]
    %v77 = vld [vmem:[%s1 + $0x1a8] sm:$0xff]
    %v78 = vld [vmem:[%s1 + $0x1b0] sm:$0xff]
    %v79 = vld [vmem:[%s1 + $0x1b8] sm:$0xff]
    %v80 = vld [vmem:[%s1 + $0x1c0] sm:$0xff]
    %v81 = vld [vmem:[%s1 + $0x1c8] sm:$0xff]
    %v82 = vld [vmem:[%s1 + $0x1d0] sm:$0xff]
    %v83 = vld [vmem:[%s1 + $0x1d8] sm:$0xff]
    %v84 = vld [vmem:[%s1 + $0x1e0] sm:$0xff]
    %v85 = vld [vmem:[%s1 + $0x1e8] sm:$0xff]
    %v86 = vld [vmem:[%s1 + $0x1f0] sm:$0xff]
    %v87 = vld [vmem:[%s1 + $0x1f8] sm:$0xff]
    %s88 = sld [smem:[#allocation2]]
    %v89 = vstv %s88
    %90 = vmatprep.subr.mxu0 0.0
    %91 = vmatpush1.msra.mxu0 %v39
    %92 = vmatprep.subr.mxu0 0.0
    %93 = vmatpush1.msra.mxu0 %v38
    %94 = vmatprep.subr.mxu0 0.0
    %95 = vmatpush1.msra.mxu0 %v37
    %96 = vmatprep.subr.mxu0 0.0
    %97 = vmatpush1.msra.mxu0 %v36
    %98 = vmatprep.subr.mxu0 0.0
    %99 = vmatpush1.msra.mxu0 %v35
    %100 = vmatprep.subr.mxu0 0.0
    %101 = vmatpush1.msra.mxu0 %v34
    %102 = vmatprep.subr.mxu0 0.0
    %103 = vmatpush1.msra.mxu0 %v33
    %104 = vmatprep.subr.mxu0 0.0
    %105 = vmatpush1.msra.mxu0 %v32
    %106 = vmatprep.subr.mxu0 0.0
    %107 = vmatpush1.msra.mxu0 %v31
    %108 = vmatprep.subr.mxu0 0.0
    %109 = vmatpush1.msra.mxu0 %v30
    %110 = vmatprep.subr.mxu0 0.0
    %111 = vmatpush1.msra.mxu0 %v29
    %112 = vmatprep.subr.mxu0 0.0
    %113 = vmatpush1.msra.mxu0 %v28
    %114 = vmatprep.subr.mxu0 0.0
    %115 = vmatpush1.msra.mxu0 %v27
    %116 = vmatprep.subr.mxu0 0.0
    %117 = vmatpush1.msra.mxu0 %v26
    %118 = vmatprep.subr.mxu0 0.0
    %119 = vmatpush1.msra.mxu0 %v25
    %120 = vmatprep.subr.mxu0 0.0
    %121 = vmatpush1.msra.mxu0 %v24
    %122 = vmatprep.subr.mxu0 0.0
    %123 = vmatpush2.msra.mxu0 %v55
    %124 = vmatprep.subr.mxu0 0.0
    %125 = vmatpush2.msra.mxu0 %v54
    %126 = vmatprep.subr.mxu0 0.0
    %127 = vmatpush2.msra.mxu0 %v53
    %128 = vmatprep.subr.mxu0 0.0
    %129 = vmatpush2.msra.mxu0 %v52
    %130 = vmatprep.subr.mxu0 0.0
    %131 = vmatpush2.msra.mxu0 %v51
    %132 = vmatprep.subr.mxu0 0.0
    %133 = vmatpush2.msra.mxu0 %v50
    %134 = vmatprep.subr.mxu0 0.0
    %135 = vmatpush2.msra.mxu0 %v49
    %136 = vmatprep.subr.mxu0 0.0
    %137 = vmatpush2.msra.mxu0 %v48
    %138 = vmatprep.subr.mxu0 0.0
    %139 = vmatpush2.msra.mxu0 %v47
    %140 = vmatprep.subr.mxu0 0.0
    %141 = vmatpush2.msra.mxu0 %v46
    %142 = vmatprep.subr.mxu0 0.0
    %143 = vmatpush2.msra.mxu0 %v45
    %144 = vmatprep.subr.mxu0 0.0
    %145 = vmatpush2.msra.mxu0 %v44
    %146 = vmatprep.subr.mxu0 0.0
    %147 = vmatpush2.msra.mxu0 %v43
    %148 = vmatprep.subr.mxu0 0.0
    %149 = vmatpush2.msra.mxu0 %v42
    %150 = vmatprep.subr.mxu0 0.0
    %151 = vmatpush2.msra.mxu0 %v41
    %152 = vmatprep.subr.mxu0 0.0
    %153 = vmatpush2.msra.mxu0 %v40
    %154 = vmatprep.mubr.f32.mxu0 %v17
    %155 = vmatmul.mubr.f32.gmra.mxu0 %v16
    %v156 = vpop.f32.mrf.mxu0
    %v157 = vadd.f32 %v89, %v156
    %v158 = vpop.f32.mrf.mxu0
    %159 = vmatprep.mubr.f32.mxu0 %v21
    %160 = vmatmul.mubr.f32.gmra.mxu0 %v20
    %v161 = vpop.f32.mrf.mxu0
    %v162 = vadd.f32 %v89, %v161
    %v163 = vpop.f32.mrf.mxu0
    %164 = vdwg.mxu0
    %165 = vmatprep.subr.mxu0 0.0
    %166 = vmatpush1.msra.mxu0 %v71
    %167 = vmatprep.subr.mxu0 0.0
    %168 = vmatpush1.msra.mxu0 %v70
    %169 = vmatprep.subr.mxu0 0.0
    %170 = vmatpush1.msra.mxu0 %v69
    %171 = vmatprep.subr.mxu0 0.0
    %172 = vmatpush1.msra.mxu0 %v68
    %173 = vmatprep.subr.mxu0 0.0
    %174 = vmatpush1.msra.mxu0 %v67
    %175 = vmatprep.subr.mxu0 0.0
    %176 = vmatpush1.msra.mxu0 %v66
    %177 = vmatprep.subr.mxu0 0.0
    %178 = vmatpush1.msra.mxu0 %v65
    %179 = vmatprep.subr.mxu0 0.0
    %180 = vmatpush1.msra.mxu0 %v64
    %181 = vmatprep.subr.mxu0 0.0
    %182 = vmatpush1.msra.mxu0 %v63
    %183 = vmatprep.subr.mxu0 0.0
    %184 = vmatpush1.msra.mxu0 %v62
    %185 = vmatprep.subr.mxu0 0.0
    %186 = vmatpush1.msra.mxu0 %v61
    %187 = vmatprep.subr.mxu0 0.0
    %188 = vmatpush1.msra.mxu0 %v60
    %189 = vmatprep.subr.mxu0 0.0
    %190 = vmatpush1.msra.mxu0 %v59
    %191 = vmatprep.subr.mxu0 0.0
    %192 = vmatpush1.msra.mxu0 %v58
    %193 = vmatprep.subr.mxu0 0.0
    %194 = vmatpush1.msra.mxu0 %v57
    %195 = vmatprep.subr.mxu0 0.0
    %196 = vmatpush1.msra.mxu0 %v56
    %197 = vmatprep.subr.mxu0 0.0
    %198 = vmatpush2.msra.mxu0 %v87
    %199 = vmatprep.subr.mxu0 0.0
    %200 = vmatpush2.msra.mxu0 %v86
    %201 = vmatprep.subr.mxu0 0.0
    %202 = vmatpush2.msra.mxu0 %v85
    %203 = vmatprep.subr.mxu0 0.0
    %204 = vmatpush2.msra.mxu0 %v84
    %205 = vmatprep.subr.mxu0 0.0
    %206 = vmatpush2.msra.mxu0 %v83
    %207 = vmatprep.subr.mxu0 0.0
    %208 = vmatpush2.msra.mxu0 %v82
    %209 = vmatprep.subr.mxu0 0.0
    %210 = vmatpush2.msra.mxu0 %v81
    %211 = vmatprep.subr.mxu0 0.0
    %212 = vmatpush2.msra.mxu0 %v80
    %213 = vmatprep.subr.mxu0 0.0
    %214 = vmatpush2.msra.mxu0 %v79
    %215 = vmatprep.subr.mxu0 0.0
    %216 = vmatpush2.msra.mxu0 %v78
    %217 = vmatprep.subr.mxu0 0.0
    %218 = vmatpush2.msra.mxu0 %v77
    %219 = vmatprep.subr.mxu0 0.0
    %220 = vmatpush2.msra.mxu0 %v76
    %221 = vmatprep.subr.mxu0 0.0
    %222 = vmatpush2.msra.mxu0 %v75
    %223 = vmatprep.subr.mxu0 0.0
    %224 = vmatpush2.msra.mxu0 %v74
    %225 = vmatprep.subr.mxu0 0.0
    %226 = vmatpush2.msra.mxu0 %v73
    %227 = vmatprep.subr.mxu0 0.0
    %228 = vmatpush2.msra.mxu0 %v72
    %229 = vmatprep.mubr.f32.mxu0 %v19
    %230 = vmatmul.mubr.f32.gmra.mxu0 %v18
    %v231 = vpop.f32.mrf.mxu0
    %v232 = vadd.f32 %v157, %v231
    %v233 = vpop.f32.mrf.mxu0
    %234 = vmatprep.mubr.f32.mxu0 %v23
    %235 = vmatmul.mubr.f32.gmra.mxu0 %v22
    %v236 = vpop.f32.mrf.mxu0
    %v237 = vadd.f32 %v162, %v236
    %v238 = vpop.f32.mrf.mxu0
    %239 = vdwg.mxu0
    %v240 = vxor.u32 %v232, 2147483648
    %v241 = vxor.u32 %v237, 2147483648
    %v242 = vmul.f32 %v240, 1.442695
    %v243 = vpow.pop %v242
    %v244 = vmul.f32 %v241, 1.442695
    %v245 = vpow.pop %v244
    %v246 = vadd.f32 %v243, 1.0
    %v247 = vadd.f32 %v245, 1.0
    %v248 = vrcp.pop %v246
    %v249 = vmul.f32 1.0, %v248
    %v250 = vrcp.pop %v247
    %v251 = vmul.f32 1.0, %v250
    %252 = vst [vmem:[#allocation3] sm:$0xff] %v249
    %253 = vst [vmem:[#allocation3 + $0x8] sm:$0xff] %v251
    // Predicated region
    $region14: #{panic_disorder_logreg.1} parent=1 // pred_check
      _
    $region15: #{panic_disorder_logreg.1} parent=1 // pred_check_branch
      %255 = sbr.rel (0) target = $region17
    $region16: #{panic_disorder_logreg.1} parent=1 // pred_region
      %s257 = ssub.s32 256, 256
      %258 = vsyncadd [#allocation4], %s257
      %s259 = sshll.u32 [#allocation3], 4
      %s260 = int_to_ptr.vmem [resolvable:$true] %s259
      %265 = dma.vmem_to_hbm [thread:$0]  %s260, 256, %s3, [#allocation4], 128, 128, 8
    $region17: #{panic_disorder_logreg.1} parent=1 // pred_fallthru
      _
    // Predicated region
    $region18: #{panic_disorder_logreg.1} parent=1 // pred_check
      _
    $region19: #{panic_disorder_logreg.1} parent=1 // pred_check_branch
      %267 = sbr.rel (0) target = $region21
    $region20: #{panic_disorder_logreg.1} parent=1 // pred_region
      %268 = dma.done [#allocation4], 256
    $region21: #{panic_disorder_logreg.1} parent=1 // pred_fallthru
      _
    %269 = vsyncpa [#allocation4], 1

</llo_original>
